<compile_context>
chip_gen: v7x
topology: tpu7x:2x2x1
jax: 0.10.0
libtpu: 0.0.40
codegen_flags: <defaults>
</compile_context>

<pallas_src>
import functools

import jax
import jax.numpy as jnp
from jax.experimental import pallas as pl
from jax.experimental.pallas import tpu as pltpu


def _focal_conv_kernel(w_ref, x_ref, o_ref, patches_ref, *,
                       C_in, kh, kw, W, M, padding, K, K_pad, negative_slope):
    """One (sample, H-chunk) step.

    w_ref:       (C_out, K_pad)  bf16 resident weight
    x_ref:       (C_in, Lf)      bf16 zero-padded flat chunk
    o_ref:       (C_out, M)      output tile (NCHW memory order)
    patches_ref: (K_pad, M)      bf16 VMEM scratch (in-kernel im2col)
    """
    # Zero the sublane-padding rows once per step (avoid 0 * garbage = NaN in
    # the MXU accumulate; the matching weight columns are already zero).
    if K_pad > K:
        patches_ref[K:, :] = jnp.zeros((K_pad - K, M), patches_ref.dtype)

    # Column index within an output row (hoisted; only depends on the lane).
    col = jax.lax.broadcasted_iota(jnp.int32, (C_in, M), 1) % W

    # In-kernel im2col: one static offset load per (dh, dw) tap.  Vertical
    # (dh) padding is real zeros in the flat layout; only horizontal taps
    # (dw != padding) can read across a row boundary and need masking.
    for dh in range(kh):
        for dw in range(kw):
            tap = x_ref[:, pl.ds(dh * W + dw, M)]          # (C_in, M) bf16 slab
            if dw != padding:
                off = dw - padding
                valid = jnp.logical_and(col + off >= 0, col + off < W)
                tap = jnp.where(valid, tap, jnp.zeros_like(tap))  # vsel, bf16-safe
            r0 = (dh * kw + dw) * C_in
            patches_ref[r0:r0 + C_in, :] = tap

    # One MXU matmul per chunk: bf16 x bf16 -> f32 accumulate.
    z = jnp.dot(w_ref[...], patches_ref[...],
                preferred_element_type=jnp.float32)
    z = jnp.where(z > 0, z, negative_slope * z)            # fused leaky_relu (f32)
    o_ref[...] = z.astype(o_ref.dtype)


def focal_conv2d(x, weight, halving, padding=1, negative_slope=0.01,
                 compute_dtype=jnp.bfloat16, out_dtype=None):
    """Forward of FocalConv2d (Conv2d bias=False, stride=1) + leaky_relu.

    Set compute_dtype=jnp.float32 if full f32 fidelity is required; the
    default streams the input/weight in bf16 (accumulation stays f32).
    On v5e, out_dtype=jnp.bfloat16 halves the output write bytes.
    """
    N, C_in, H, W = x.shape
    C_out, C_w, kh, kw = weight.shape
    assert C_w == C_in
    nc = 2 ** halving
    assert H % nc == 0, "H must be divisible by 2**halving"
    # TODO(synk): only stride=1, dilation=1, bias=False and 'same'-width
    # padding (2*padding == kw - 1) are implemented -- matches the module cfg.
    assert 2 * padding == kw - 1, "kernel assumes 2*padding == kernel_size - 1"

    out_dtype = x.dtype if out_dtype is None else out_dtype

    Hs = H // nc                         # chunk height
    Ho = Hs + 2 * padding - kh + 1       # output rows per chunk
    M = Ho * W                           # output pixels per chunk (lane axis)
    lead = padding * W + padding         # top zero rows + flat front pad
    Lf = Hs * W + 2 * lead               # flat per-chunk length
    K = C_in * kh * kw
    K_pad = ((K + 15) // 16) * 16        # bf16 sublane packing

    # (N, nc, C_in, Lf): chunk axis third-minor so every tap load is a clean
    # sublane x lane slab.  One pad pass; HBM stream in compute_dtype.
    xf = x.reshape(N, C_in, nc, Hs, W).transpose(0, 2, 1, 3, 4)
    xf = xf.reshape(N, nc, C_in, Hs * W)
    xf = jnp.pad(xf, ((0, 0), (0, 0), (0, 0), (lead, lead))).astype(compute_dtype)

    # Weight flattened to (C_out, K) in (dh, dw, ci) order, matching the
    # patches-row order; K zero-padded to K_pad.
    w2d = weight.transpose(0, 2, 3, 1).reshape(C_out, K).astype(compute_dtype)
    if K_pad > K:
        w2d = jnp.pad(w2d, ((0, 0), (0, K_pad - K)))

    kernel = functools.partial(
        _focal_conv_kernel, C_in=C_in, kh=kh, kw=kw, W=W, M=M,
        padding=padding, K=K, K_pad=K_pad, negative_slope=negative_slope)

    c_size = jnp.dtype(compute_dtype).itemsize
    o_size = jnp.dtype(out_dtype).itemsize
    # Per-step VMEM: double-buffered input/output/weight blocks + scratch.
    step_bytes = (2 * C_in * Lf * c_size + 2 * C_out * M * o_size
                  + 2 * C_out * K_pad * c_size + K_pad * M * c_size)
    # Generous but generation-safe (v7x has only 64 MiB per TensorCore).
    vmem_limit = int(min(max(4 * step_bytes, 32 * 1024 * 1024),
                         48 * 1024 * 1024))

    cost = pl.CostEstimate(
        flops=2 * N * nc * C_out * K * M,
        transcendentals=0,
        bytes_accessed=(xf.size * c_size + w2d.size * c_size
                        + N * C_out * nc * M * o_size))

    out = pl.pallas_call(
        kernel,
        out_shape=jax.ShapeDtypeStruct((N, C_out, nc * M), out_dtype),
        grid=(N, nc),
        in_specs=[
            pl.BlockSpec((C_out, K_pad), lambda n, c: (0, 0)),        # weight (resident)
            pl.BlockSpec((None, None, C_in, Lf), lambda n, c: (n, c, 0, 0)),  # one chunk
        ],
        out_specs=pl.BlockSpec((None, C_out, M), lambda n, c: (n, 0, c)),
        scratch_shapes=[pltpu.VMEM((K_pad, M), compute_dtype)],
        compiler_params=pltpu.CompilerParams(
            dimension_semantics=("parallel", "parallel"),
            vmem_limit_bytes=vmem_limit),
        cost_estimate=cost,
    )(w2d, xf)

    # (N, C_out, nc*Ho*W) is already NCHW memory order -> free reshape.
    return out.reshape(N, C_out, nc * Ho, W)


def focal_conv2d_ref(x, weight, halving, padding=1, negative_slope=0.01):
    """Pure-JAX reference mirroring the PyTorch forward."""
    nc = 2 ** halving
    split = x.shape[2] // nc
    outs = []
    for c in range(nc):
        xc = x[:, :, c * split:(c + 1) * split, :]
        z = jax.lax.conv_general_dilated(
            xc, weight, window_strides=(1, 1),
            padding=((padding, padding), (padding, padding)),
            dimension_numbers=("NCHW", "OIHW", "NCHW"))
        outs.append(z)
    z = jnp.concatenate(outs, axis=2)
    return jnp.where(z > 0, z, negative_slope * z)


if __name__ == "__main__":
    key = jax.random.PRNGKey(0)
    k_x, k_w = jax.random.split(key)

    # module config: FocalConv2d(in_channels=4, out_channels=8,
    #                            kernel_size=3, halving=1, padding=1)
    N, C_in, H, W = 2, 4, 16, 16
    C_out, ksize, halving, padding = 8, 3, 1, 1

    x = jax.random.normal(k_x, (N, C_in, H, W), dtype=jnp.float32)
    weight = 0.1 * jax.random.normal(
        k_w, (C_out, C_in, ksize, ksize), dtype=jnp.float32)

    run = jax.jit(lambda xx, ww: focal_conv2d(xx, ww, halving, padding))
    out = jax.block_until_ready(run(x, weight))

    ref = focal_conv2d_ref(x, weight, halving, padding)
    assert out.shape == (N, C_out, H, W), out.shape
    # input + weight stream in bf16 -> compare at bf16 tolerance
    assert jnp.allclose(out, ref, atol=3e-2, rtol=2e-2), float(
        jnp.max(jnp.abs(out - ref)))
    print("KERNEL_OK")
</pallas_src>

<mosaic_0001>
module attributes {stable_mosaic.version = 11 : i64} {
  func.func @_focal_conv_kernel(%arg0: i32, %arg1: i32, %arg2: memref<8x48xbf16, #tpu.memory_space<vmem>>, %arg3: memref<1x1x4x162xbf16, #tpu.memory_space<vmem>>, %arg4: memref<1x8x128xf32, #tpu.memory_space<vmem>>, %arg5: memref<48x128xbf16, #tpu.memory_space<vmem>>) attributes {dimension_semantics = [#tpu.dimension_semantics<parallel>, #tpu.dimension_semantics<parallel>], iteration_bounds = array<i64: 2, 2>, scalar_prefetch = 0 : i64, scratch_operands = 1 : i64, tpu.core_type = #tpu.core_type<tc>, window_params = [{pipeline_mode = #tpu.pipeline_mode<synchronous>, transform_indices = @transform_0, window_bounds = array<i64: 8, 48>}, {transform_indices = @transform_1, window_bounds = array<i64: 1, 1, 4, 162>}, {transform_indices = @transform_2, window_bounds = array<i64: 1, 8, 128>}]} {
    %cst = arith.constant 0.000000e+00 : bf16
    %0 = vector.broadcast %cst : bf16 to vector<12x128xbf16>
    %c36 = arith.constant 36 : index
    %c0 = arith.constant 0 : index
    %1 = vector.load %arg5[%c36, %c0] : memref<48x128xbf16, #tpu.memory_space<vmem>>, vector<12x128xbf16>
    tpu.vector_store %arg5[%c36, %c0], %0 {strides = array<i32>} : memref<48x128xbf16, #tpu.memory_space<vmem>>, vector<12x128xbf16>,
    %2 = tpu.iota {dimensions = array<i32: 1>} : vector<4x128xi32>
    %c16_i32 = arith.constant 16 : i32
    %c0_i32 = arith.constant 0 : i32
    %3 = arith.cmpi eq, %c16_i32, %c0_i32 : i32
    %c1_i32 = arith.constant 1 : i32
    %4 = arith.select %3, %c1_i32, %c16_i32 : i32
    %5 = vector.broadcast %4 : i32 to vector<4x128xi32>
    %6 = arith.remsi %2, %5 : vector<4x128xi32>
    %c0_i32_0 = arith.constant 0 : i32
    %7 = vector.broadcast %c0_i32_0 : i32 to vector<4x128xi32>
    %8 = arith.cmpi ne, %6, %7 : vector<4x128xi32>
    %c0_i32_1 = arith.constant 0 : i32
    %9 = vector.broadcast %c0_i32_1 : i32 to vector<4x128xi32>
    %10 = arith.cmpi slt, %6, %9 : vector<4x128xi32>
    %c0_i32_2 = arith.constant 0 : i32
    %11 = arith.cmpi slt, %4, %c0_i32_2 : i32
    %12 = vector.broadcast %11 : i1 to vector<4x128xi1>
    %13 = vector.broadcast %12 : vector<4x128xi1> to vector<4x128xi1>
    %14 = arith.xori %10, %13 : vector<4x128xi1>
    %15 = arith.andi %14, %8 : vector<4x128xi1>
    %16 = vector.broadcast %4 : i32 to vector<4x128xi32>
    %17 = arith.addi %6, %16 : vector<4x128xi32>
    %18 = arith.select %15, %17, %6 : vector<4x128xi1>, vector<4x128xi32>
    %c0_3 = arith.constant 0 : index
    %c0_4 = arith.constant 0 : index
    %c0_5 = arith.constant 0 : index
    %c0_6 = arith.constant 0 : index
    %19 = vector.load %arg3[%c0_3, %c0_4, %c0_5, %c0_6] : memref<1x1x4x162xbf16, #tpu.memory_space<vmem>>, vector<1x1x4x128xbf16>
    %20 = vector.shape_cast %19 : vector<1x1x4x128xbf16> to vector<4x128xbf16>
    %c-1_i32 = arith.constant -1 : i32
    %21 = vector.broadcast %c-1_i32 : i32 to vector<4x128xi32>
    %22 = arith.addi %18, %21 : vector<4x128xi32>
    %c0_i32_7 = arith.constant 0 : i32
    %23 = vector.broadcast %c0_i32_7 : i32 to vector<4x128xi32>
    %24 = arith.cmpi sge, %22, %23 : vector<4x128xi32>
    %c-1_i32_8 = arith.constant -1 : i32
    %25 = vector.broadcast %c-1_i32_8 : i32 to vector<4x128xi32>
    %26 = arith.addi %18, %25 : vector<4x128xi32>
    %c16_i32_9 = arith.constant 16 : i32
    %27 = vector.broadcast %c16_i32_9 : i32 to vector<4x128xi32>
    %28 = arith.cmpi slt, %26, %27 : vector<4x128xi32>
    %29 = arith.andi %24, %28 : vector<4x128xi1>
    %cst_10 = arith.constant 0.000000e+00 : bf16
    %30 = vector.broadcast %cst_10 : bf16 to vector<4x128xbf16>
    %31 = arith.select %29, %20, %30 : vector<4x128xi1>, vector<4x128xbf16>
    %c0_11 = arith.constant 0 : index
    %c0_12 = arith.constant 0 : index
    %32 = vector.load %arg5[%c0_11, %c0_12] : memref<48x128xbf16, #tpu.memory_space<vmem>>, vector<4x128xbf16>
    tpu.vector_store %arg5[%c0_11, %c0_12], %31 {strides = array<i32>} : memref<48x128xbf16, #tpu.memory_space<vmem>>, vector<4x128xbf16>,
    %c0_13 = arith.constant 0 : index
    %c0_14 = arith.constant 0 : index
    %c0_15 = arith.constant 0 : index
    %c1 = arith.constant 1 : index
    %33 = vector.load %arg3[%c0_13, %c0_14, %c0_15, %c1] : memref<1x1x4x162xbf16, #tpu.memory_space<vmem>>, vector<1x1x4x128xbf16>
    %34 = vector.shape_cast %33 : vector<1x1x4x128xbf16> to vector<4x128xbf16>
    %c4 = arith.constant 4 : index
    %c0_16 = arith.constant 0 : index
    %35 = vector.load %arg5[%c4, %c0_16] : memref<48x128xbf16, #tpu.memory_space<vmem>>, vector<4x128xbf16>
    tpu.vector_store %arg5[%c4, %c0_16], %34 {strides = array<i32>} : memref<48x128xbf16, #tpu.memory_space<vmem>>, vector<4x128xbf16>,
    %c0_17 = arith.constant 0 : index
    %c0_18 = arith.constant 0 : index
    %c0_19 = arith.constant 0 : index
    %c2 = arith.constant 2 : index
    %36 = vector.load %arg3[%c0_17, %c0_18, %c0_19, %c2] : memref<1x1x4x162xbf16, #tpu.memory_space<vmem>>, vector<1x1x4x128xbf16>
    %37 = vector.shape_cast %36 : vector<1x1x4x128xbf16> to vector<4x128xbf16>
    %c1_i32_20 = arith.constant 1 : i32
    %38 = vector.broadcast %c1_i32_20 : i32 to vector<4x128xi32>
    %39 = arith.addi %18, %38 : vector<4x128xi32>
    %c0_i32_21 = arith.constant 0 : i32
    %40 = vector.broadcast %c0_i32_21 : i32 to vector<4x128xi32>
    %41 = arith.cmpi sge, %39, %40 : vector<4x128xi32>
    %c1_i32_22 = arith.constant 1 : i32
    %42 = vector.broadcast %c1_i32_22 : i32 to vector<4x128xi32>
    %43 = arith.addi %18, %42 : vector<4x128xi32>
    %c16_i32_23 = arith.constant 16 : i32
    %44 = vector.broadcast %c16_i32_23 : i32 to vector<4x128xi32>
    %45 = arith.cmpi slt, %43, %44 : vector<4x128xi32>
    %46 = arith.andi %41, %45 : vector<4x128xi1>
    %cst_24 = arith.constant 0.000000e+00 : bf16
    %47 = vector.broadcast %cst_24 : bf16 to vector<4x128xbf16>
    %48 = arith.select %46, %37, %47 : vector<4x128xi1>, vector<4x128xbf16>
    %c8 = arith.constant 8 : index
    %c0_25 = arith.constant 0 : index
    %49 = vector.load %arg5[%c8, %c0_25] : memref<48x128xbf16, #tpu.memory_space<vmem>>, vector<4x128xbf16>
    tpu.vector_store %arg5[%c8, %c0_25], %48 {strides = array<i32>} : memref<48x128xbf16, #tpu.memory_space<vmem>>, vector<4x128xbf16>,
    %c0_26 = arith.constant 0 : index
    %c0_27 = arith.constant 0 : index
    %c0_28 = arith.constant 0 : index
    %c16 = arith.constant 16 : index
    %50 = vector.load %arg3[%c0_26, %c0_27, %c0_28, %c16] : memref<1x1x4x162xbf16, #tpu.memory_space<vmem>>, vector<1x1x4x128xbf16>
    %51 = vector.shape_cast %50 : vector<1x1x4x128xbf16> to vector<4x128xbf16>
    %c-1_i32_29 = arith.constant -1 : i32
    %52 = vector.broadcast %c-1_i32_29 : i32 to vector<4x128xi32>
    %53 = arith.addi %18, %52 : vector<4x128xi32>
    %c0_i32_30 = arith.constant 0 : i32
    %54 = vector.broadcast %c0_i32_30 : i32 to vector<4x128xi32>
    %55 = arith.cmpi sge, %53, %54 : vector<4x128xi32>
    %c-1_i32_31 = arith.constant -1 : i32
    %56 = vector.broadcast %c-1_i32_31 : i32 to vector<4x128xi32>
    %57 = arith.addi %18, %56 : vector<4x128xi32>
    %c16_i32_32 = arith.constant 16 : i32
    %58 = vector.broadcast %c16_i32_32 : i32 to vector<4x128xi32>
    %59 = arith.cmpi slt, %57, %58 : vector<4x128xi32>
    %60 = arith.andi %55, %59 : vector<4x128xi1>
    %cst_33 = arith.constant 0.000000e+00 : bf16
    %61 = vector.broadcast %cst_33 : bf16 to vector<4x128xbf16>
    %62 = arith.select %60, %51, %61 : vector<4x128xi1>, vector<4x128xbf16>
    %c12 = arith.constant 12 : index
    %c0_34 = arith.constant 0 : index
    %63 = vector.load %arg5[%c12, %c0_34] : memref<48x128xbf16, #tpu.memory_space<vmem>>, vector<4x128xbf16>
    tpu.vector_store %arg5[%c12, %c0_34], %62 {strides = array<i32>} : memref<48x128xbf16, #tpu.memory_space<vmem>>, vector<4x128xbf16>,
    %c0_35 = arith.constant 0 : index
    %c0_36 = arith.constant 0 : index
    %c0_37 = arith.constant 0 : index
    %c17 = arith.constant 17 : index
    %64 = vector.load %arg3[%c0_35, %c0_36, %c0_37, %c17] : memref<1x1x4x162xbf16, #tpu.memory_space<vmem>>, vector<1x1x4x128xbf16>
    %65 = vector.shape_cast %64 : vector<1x1x4x128xbf16> to vector<4x128xbf16>
    %c16_38 = arith.constant 16 : index
    %c0_39 = arith.constant 0 : index
    %66 = vector.load %arg5[%c16_38, %c0_39] : memref<48x128xbf16, #tpu.memory_space<vmem>>, vector<4x128xbf16>
    tpu.vector_store %arg5[%c16_38, %c0_39], %65 {strides = array<i32>} : memref<48x128xbf16, #tpu.memory_space<vmem>>, vector<4x128xbf16>,
    %c0_40 = arith.constant 0 : index
    %c0_41 = arith.constant 0 : index
    %c0_42 = arith.constant 0 : index
    %c18 = arith.constant 18 : index
    %67 = vector.load %arg3[%c0_40, %c0_41, %c0_42, %c18] : memref<1x1x4x162xbf16, #tpu.memory_space<vmem>>, vector<1x1x4x128xbf16>
    %68 = vector.shape_cast %67 : vector<1x1x4x128xbf16> to vector<4x128xbf16>
    %c1_i32_43 = arith.constant 1 : i32
    %69 = vector.broadcast %c1_i32_43 : i32 to vector<4x128xi32>
    %70 = arith.addi %18, %69 : vector<4x128xi32>
    %c0_i32_44 = arith.constant 0 : i32
    %71 = vector.broadcast %c0_i32_44 : i32 to vector<4x128xi32>
    %72 = arith.cmpi sge, %70, %71 : vector<4x128xi32>
    %c1_i32_45 = arith.constant 1 : i32
    %73 = vector.broadcast %c1_i32_45 : i32 to vector<4x128xi32>
    %74 = arith.addi %18, %73 : vector<4x128xi32>
    %c16_i32_46 = arith.constant 16 : i32
    %75 = vector.broadcast %c16_i32_46 : i32 to vector<4x128xi32>
    %76 = arith.cmpi slt, %74, %75 : vector<4x128xi32>
    %77 = arith.andi %72, %76 : vector<4x128xi1>
    %cst_47 = arith.constant 0.000000e+00 : bf16
    %78 = vector.broadcast %cst_47 : bf16 to vector<4x128xbf16>
    %79 = arith.select %77, %68, %78 : vector<4x128xi1>, vector<4x128xbf16>
    %c20 = arith.constant 20 : index
    %c0_48 = arith.constant 0 : index
    %80 = vector.load %arg5[%c20, %c0_48] : memref<48x128xbf16, #tpu.memory_space<vmem>>, vector<4x128xbf16>
    tpu.vector_store %arg5[%c20, %c0_48], %79 {strides = array<i32>} : memref<48x128xbf16, #tpu.memory_space<vmem>>, vector<4x128xbf16>,
    %c0_49 = arith.constant 0 : index
    %c0_50 = arith.constant 0 : index
    %c0_51 = arith.constant 0 : index
    %c32 = arith.constant 32 : index
    %81 = vector.load %arg3[%c0_49, %c0_50, %c0_51, %c32] : memref<1x1x4x162xbf16, #tpu.memory_space<vmem>>, vector<1x1x4x128xbf16>
    %82 = vector.shape_cast %81 : vector<1x1x4x128xbf16> to vector<4x128xbf16>
    %c-1_i32_52 = arith.constant -1 : i32
    %83 = vector.broadcast %c-1_i32_52 : i32 to vector<4x128xi32>
    %84 = arith.addi %18, %83 : vector<4x128xi32>
    %c0_i32_53 = arith.constant 0 : i32
    %85 = vector.broadcast %c0_i32_53 : i32 to vector<4x128xi32>
    %86 = arith.cmpi sge, %84, %85 : vector<4x128xi32>
    %c-1_i32_54 = arith.constant -1 : i32
    %87 = vector.broadcast %c-1_i32_54 : i32 to vector<4x128xi32>
    %88 = arith.addi %18, %87 : vector<4x128xi32>
    %c16_i32_55 = arith.constant 16 : i32
    %89 = vector.broadcast %c16_i32_55 : i32 to vector<4x128xi32>
    %90 = arith.cmpi slt, %88, %89 : vector<4x128xi32>
    %91 = arith.andi %86, %90 : vector<4x128xi1>
    %cst_56 = arith.constant 0.000000e+00 : bf16
    %92 = vector.broadcast %cst_56 : bf16 to vector<4x128xbf16>
    %93 = arith.select %91, %82, %92 : vector<4x128xi1>, vector<4x128xbf16>
    %c24 = arith.constant 24 : index
    %c0_57 = arith.constant 0 : index
    %94 = vector.load %arg5[%c24, %c0_57] : memref<48x128xbf16, #tpu.memory_space<vmem>>, vector<4x128xbf16>
    tpu.vector_store %arg5[%c24, %c0_57], %93 {strides = array<i32>} : memref<48x128xbf16, #tpu.memory_space<vmem>>, vector<4x128xbf16>,
    %c0_58 = arith.constant 0 : index
    %c0_59 = arith.constant 0 : index
    %c0_60 = arith.constant 0 : index
    %c33 = arith.constant 33 : index
    %95 = vector.load %arg3[%c0_58, %c0_59, %c0_60, %c33] : memref<1x1x4x162xbf16, #tpu.memory_space<vmem>>, vector<1x1x4x128xbf16>
    %96 = vector.shape_cast %95 : vector<1x1x4x128xbf16> to vector<4x128xbf16>
    %c28 = arith.constant 28 : index
    %c0_61 = arith.constant 0 : index
    %97 = vector.load %arg5[%c28, %c0_61] : memref<48x128xbf16, #tpu.memory_space<vmem>>, vector<4x128xbf16>
    tpu.vector_store %arg5[%c28, %c0_61], %96 {strides = array<i32>} : memref<48x128xbf16, #tpu.memory_space<vmem>>, vector<4x128xbf16>,
    %c0_62 = arith.constant 0 : index
    %c0_63 = arith.constant 0 : index
    %c0_64 = arith.constant 0 : index
    %c34 = arith.constant 34 : index
    %98 = vector.load %arg3[%c0_62, %c0_63, %c0_64, %c34] : memref<1x1x4x162xbf16, #tpu.memory_space<vmem>>, vector<1x1x4x128xbf16>
    %99 = vector.shape_cast %98 : vector<1x1x4x128xbf16> to vector<4x128xbf16>
    %c1_i32_65 = arith.constant 1 : i32
    %100 = vector.broadcast %c1_i32_65 : i32 to vector<4x128xi32>
    %101 = arith.addi %18, %100 : vector<4x128xi32>
    %c0_i32_66 = arith.constant 0 : i32
    %102 = vector.broadcast %c0_i32_66 : i32 to vector<4x128xi32>
    %103 = arith.cmpi sge, %101, %102 : vector<4x128xi32>
    %c1_i32_67 = arith.constant 1 : i32
    %104 = vector.broadcast %c1_i32_67 : i32 to vector<4x128xi32>
    %105 = arith.addi %18, %104 : vector<4x128xi32>
    %c16_i32_68 = arith.constant 16 : i32
    %106 = vector.broadcast %c16_i32_68 : i32 to vector<4x128xi32>
    %107 = arith.cmpi slt, %105, %106 : vector<4x128xi32>
    %108 = arith.andi %103, %107 : vector<4x128xi1>
    %cst_69 = arith.constant 0.000000e+00 : bf16
    %109 = vector.broadcast %cst_69 : bf16 to vector<4x128xbf16>
    %110 = arith.select %108, %99, %109 : vector<4x128xi1>, vector<4x128xbf16>
    %c32_70 = arith.constant 32 : index
    %c0_71 = arith.constant 0 : index
    %111 = vector.load %arg5[%c32_70, %c0_71] : memref<48x128xbf16, #tpu.memory_space<vmem>>, vector<4x128xbf16>
    tpu.vector_store %arg5[%c32_70, %c0_71], %110 {strides = array<i32>} : memref<48x128xbf16, #tpu.memory_space<vmem>>, vector<4x128xbf16>,
    %c0_72 = arith.constant 0 : index
    %c0_73 = arith.constant 0 : index
    %112 = vector.load %arg2[%c0_72, %c0_73] : memref<8x48xbf16, #tpu.memory_space<vmem>>, vector<8x48xbf16>
    %c0_74 = arith.constant 0 : index
    %c0_75 = arith.constant 0 : index
    %113 = vector.load %arg5[%c0_74, %c0_75] : memref<48x128xbf16, #tpu.memory_space<vmem>>, vector<48x128xbf16>
    %cst_76 = arith.constant dense<0.000000e+00> : vector<8x128xf32>
    %114 = tpu.matmul %112, %113, %cst_76 {dimension_numbers = #tpu.dot_dimension_numbers<[1], [0], [0], [1], [0, 0, 1, 1], [], []>} : vector<8x48xbf16>, vector<48x128xbf16>, vector<8x128xf32> -> vector<8x128xf32>
    %cst_77 = arith.constant 0.000000e+00 : f32
    %115 = vector.broadcast %cst_77 : f32 to vector<8x128xf32>
    %116 = arith.cmpf ogt, %114, %115 : vector<8x128xf32>
    %cst_78 = arith.constant 0.00999999977 : f32
    %117 = vector.broadcast %cst_78 : f32 to vector<8x128xf32>
    %118 = arith.mulf %117, %114 : vector<8x128xf32>
    %119 = arith.select %116, %114, %118 : vector<8x128xi1>, vector<8x128xf32>
    %c0_79 = arith.constant 0 : index
    %c0_80 = arith.constant 0 : index
    %c0_81 = arith.constant 0 : index
    %120 = vector.load %arg4[%c0_79, %c0_80, %c0_81] : memref<1x8x128xf32, #tpu.memory_space<vmem>>, vector<1x8x128xf32>
    %121 = vector.shape_cast %120 : vector<1x8x128xf32> to vector<8x128xf32>
    %122 = vector.shape_cast %119 : vector<8x128xf32> to vector<1x8x128xf32>
    tpu.vector_store %arg4[%c0_79, %c0_80, %c0_81], %122 {strides = array<i32>} : memref<1x8x128xf32, #tpu.memory_space<vmem>>, vector<1x8x128xf32>,
    return
  }
  func.func @transform_0(%arg0: i32, %arg1: i32) -> (i32, i32) {
    %c0_i32 = arith.constant 0 : i32
    %c0_i32_0 = arith.constant 0 : i32
    %c0_i32_1 = arith.constant 0 : i32
    return %c0_i32, %c0_i32_0 : i32, i32
  }
  func.func @transform_1(%arg0: i32, %arg1: i32) -> (i32, i32, i32, i32) {
    %c0_i32 = arith.constant 0 : i32
    %c0_i32_0 = arith.constant 0 : i32
    %c0_i32_1 = arith.constant 0 : i32
    return %arg0, %arg1, %c0_i32, %c0_i32_0 : i32, i32, i32, i32
  }
  func.func @transform_2(%arg0: i32, %arg1: i32) -> (i32, i32, i32) {
    %c0_i32 = arith.constant 0 : i32
    %c0_i32_0 = arith.constant 0 : i32
    return %arg0, %c0_i32, %arg1 : i32, i32, i32
  }
}

</mosaic_0001>

<llo_original>
// kernel: _lambda_.1
$region0: #{_lambda_.1}
  #allocation0 [shape = 'u32[]', space=smem, size = 0x4, offset = 0x4, fixed_abs, tag = 'smem constant byte address 0x4 - core index']
  #allocation1 [shape = 'u32[144,128]{1,0:T(1,128)}', space=vmem, size = 0x12000, scoped, tag = 'internal scratch']
  #allocation2 [shape = 'bf16[48,128]{1,0:T(16,128)(2,1)}', space=vmem, size = 0x3000, scoped, tag = 'scratch operand']
  %s0 = inlined_call_operand.vmem [shape: bf16[8,48], index: 0, kind: input, shape index: {}]
  %s1 = inlined_call_operand.vmem [shape: bf16[2,2,4,162], index: 1, kind: input, shape index: {}]
  %s2 = inlined_call_operand.vmem [shape: f32[2,8,256], index: 2, kind: output, shape index: {}]
  %s3 = sld [smem:[#allocation0]]
  $region41: #{_lambda_.1} parent=0
    _
  %s5 = ssub.s32 1, %s3
  %s6 = scalar_select 0, %s5, %s3
  loop: start=0, step=1, limit=6
  $region2: #{_lambda_.1} parent=0 // loop_pre_header
    _
  $region3: #{_lambda_.1} parent=0 // loop_header
    %s8 = sphi 0, %s12
    %p9 = scmp.ge.s32.totalorder %s8, 6
    %s15 = sphi 0, %s27
    %s16 = sphi 0, %s23
    %s17 = sphi 0, %s15
    %s18 = sphi 0, %s16
    %s19 = sphi 0, %s17
    %s20 = sphi 0, %s18
    %s28 = sphi 0, %s28
    %s30 = sphi 0, %s28
    %s31 = sphi 0, %s30
    %s45 = sphi 0, %s31
    %s53 = sphi 0, %s55
    %s56 = sphi 0, %s53
    %s57 = sphi 0, %s56
    %s73 = sphi 0, %s57
    %s81 = sphi 0, %s83
    %s84 = sphi 0, %s81
    %s85 = sphi 0, %s84
    %s101 = sphi 0, %s85
  $region4: #{_lambda_.1} parent=0 // loop_header_branch
    %11 = sbr.rel (%p9) target = $region8
  $region5: #{_lambda_.1} parent=0 // loop_body
    %s13 = ssub.s32 %s8, 1
    %s14 = ssub.s32 %s8, 2
    %s21 = sadd.s32 1, %s16
    %p22 = scmp.ge.s32.totalorder %s21, 2
    %s23 = scalar_select %p22, 0, %s21
    %s24 = sadd.s32 1, %s15
    %s25 = scalar_select %p22, %s24, %s15
    %p26 = scmp.ge.s32.totalorder %s25, 2
    %s27 = scalar_select %p26, 0, %s25
    %s29 = sadd.s32 %s28, 1
    %p32 = scmp.eq.s32.totalorder %s8, 3
    %p33 = scmp.ne.s32.totalorder %s28, %s30
    %p34 = scmp.eq.s32.totalorder %s8, 0
    %p35 = por %p33, %p34
    %p36 = scmp.ne.s32.totalorder %s28, %s30
    %p37 = scmp.eq.s32.totalorder %s13, 3
    %p38 = por %p36, %p37
    %p39 = scmp.ne.s32.totalorder %s30, %s31
    %p40 = scmp.eq.s32.totalorder %s13, 0
    %p41 = por %p39, %p40
    %p42 = scmp.ne.s32.totalorder %s30, %s31
    %p43 = scmp.eq.s32.totalorder %s14, 3
    %p44 = por %p42, %p43
    %p46 = scmp.ne.s32.totalorder %s31, %s45
    %p47 = scmp.eq.s32.totalorder %s14, 0
    %p48 = por %p46, %p47
    %s49 = ssub.s32 %s15, %s27
    %s50 = ssub.s32 %s16, %s23
    %s51 = sor.u32 %s49, %s50
    %p52 = scmp.eq.s32.totalorder %s51, 0
    %s54 = sadd.s32 %s53, 1
    %s55 = scalar_select %p52, %s53, %s54
    %p58 = pneg %p52
    %p59 = scmp.eq.s32.totalorder %s8, 3
    %p60 = por %p58, %p59
    %p61 = scmp.ne.s32.totalorder %s53, %s56
    %p62 = scmp.eq.s32.totalorder %s8, 0
    %p63 = por %p61, %p62
    %p64 = scmp.ne.s32.totalorder %s53, %s56
    %p65 = scmp.eq.s32.totalorder %s13, 3
    %p66 = por %p64, %p65
    %p67 = scmp.ne.s32.totalorder %s56, %s57
    %p68 = scmp.eq.s32.totalorder %s13, 0
    %p69 = por %p67, %p68
    %p70 = scmp.ne.s32.totalorder %s56, %s57
    %p71 = scmp.eq.s32.totalorder %s14, 3
    %p72 = por %p70, %p71
    %p74 = scmp.ne.s32.totalorder %s57, %s73
    %p75 = scmp.eq.s32.totalorder %s14, 0
    %p76 = por %p74, %p75
    %s77 = ssub.s32 %s15, %s27
    %s78 = ssub.s32 %s16, %s23
    %s79 = sor.u32 %s77, %s78
    %p80 = scmp.eq.s32.totalorder %s79, 0
    %s82 = sadd.s32 %s81, 1
    %s83 = scalar_select %p80, %s81, %s82
    %p86 = pneg %p80
    %p87 = scmp.eq.s32.totalorder %s8, 3
    %p88 = por %p86, %p87
    %p89 = scmp.ne.s32.totalorder %s81, %s84
    %p90 = scmp.eq.s32.totalorder %s8, 0
    %p91 = por %p89, %p90
    %p92 = scmp.ne.s32.totalorder %s81, %s84
    %p93 = scmp.eq.s32.totalorder %s13, 3
    %p94 = por %p92, %p93
    %p95 = scmp.ne.s32.totalorder %s84, %s85
    %p96 = scmp.eq.s32.totalorder %s13, 0
    %p97 = por %p95, %p96
    %p98 = scmp.ne.s32.totalorder %s84, %s85
    %p99 = scmp.eq.s32.totalorder %s14, 3
    %p100 = por %p98, %p99
    %p102 = scmp.ne.s32.totalorder %s85, %s101
    %p103 = scmp.eq.s32.totalorder %s14, 0
    %p104 = por %p102, %p103
    %p105 = scmp.le.s32.totalorder 1, %s8
    %p106 = scmp.lt.s32.totalorder %s8, 5
    %p107 = pnand %p105, %p106
    %p108 = pneg %p107
    // Predicated region
    $region9: #{_lambda_.1} parent=5 // pred_check
      _
    $region10: #{_lambda_.1} parent=5 // pred_check_branch
      %110 = sbr.rel (%p107) target = $region12
    $region11: #{_lambda_.1} parent=5 // pred_region
      %s111 = ssub.s32 %s8, 1
      // Predicated region
      $region13: #{_lambda_.1} parent=11 // pred_check
        %p112 = pneg %p41
      $region14: #{_lambda_.1} parent=11 // pred_check_branch
        %114 = sbr.rel (%p112) target = $region16
      $region15: #{_lambda_.1} parent=11 // pred_region
        _
      $region16: #{_lambda_.1} parent=11 // pred_fallthru
        _
    $region12: #{_lambda_.1} parent=5 // pred_fallthru
      _
    %p115 = scmp.lt.s32.totalorder %s8, 4
    // Predicated region
    $region17: #{_lambda_.1} parent=5 // pred_check
      %p116 = pneg %p115
    $region18: #{_lambda_.1} parent=5 // pred_check_branch
      %118 = sbr.rel (%p116) target = $region20
    $region19: #{_lambda_.1} parent=5 // pred_region
      // Predicated region
      $region21: #{_lambda_.1} parent=19 // pred_check
        %p119 = pneg %p63
      $region22: #{_lambda_.1} parent=19 // pred_check_branch
        %121 = sbr.rel (%p119) target = $region24
      $region23: #{_lambda_.1} parent=19 // pred_region
        %p122 = scmp.lt.s32.totalorder %s15, 1
        %s123 = scalar_select %p122, %s15, 1
        %p124 = scmp.lt.s32.totalorder %s16, 1
        %s125 = scalar_select %p124, %s16, 1
        %s126 = smul.addr %s125, 2
        %s127 = smul.addr %s123, 4
        %s128 = sadd.s32 %s126, %s127
        %s129 = smul.addr %s128, 2
        %s130 = scalar_lea.vmem %s1, %s129
      $region24: #{_lambda_.1} parent=19 // pred_fallthru
        _
    $region20: #{_lambda_.1} parent=5 // pred_fallthru
      _
    %p131 = scmp.le.s32.totalorder 1, %s8
    %p132 = scmp.lt.s32.totalorder %s8, 5
    %p133 = pnand %p131, %p132
    %p134 = pneg %p133
    // Predicated region
    $region25: #{_lambda_.1} parent=5 // pred_check
      _
    $region26: #{_lambda_.1} parent=5 // pred_check_branch
      %136 = sbr.rel (%p133) target = $region28
    $region27: #{_lambda_.1} parent=5 // pred_region
      %s137 = ssub.s32 %s8, 1
      %p138 = pneg %p41
      %p139 = pneg %p38
      %p140 = scmp.lt.s32.totalorder %s17, 1
      %s141 = scalar_select %p140, %s17, 1
      %p142 = scmp.lt.s32.totalorder %s18, 1
      %s143 = scalar_select %p142, %s18, 1
      %s144 = smul.addr %s143, 2
      %s145 = smul.addr %s141, 4
      %s146 = sadd.s32 %s144, %s145
      %s147 = smul.addr %s146, 2
      %s148 = scalar_lea.vmem %s1, %s147
      %p149 = pneg %p69
      %p150 = pneg %p66
      %p151 = pneg %p97
      %p152 = pneg %p94
      %p153 = scmp.lt.s32.totalorder %s17, 1
      %s154 = scalar_select %p153, %s17, 1
      %p155 = scmp.lt.s32.totalorder %s18, 1
      %s156 = scalar_select %p155, %s18, 1
      %s157 = smul.addr %s154, 2
      %s158 = sadd.s32 %s156, %s157
      %s159 = smul.addr %s158, 8
      %s160 = scalar_lea.vmem %s2, %s159
      %p161 = scmp.lt.s32.totalorder %s17, 1
      %s162 = scalar_select %p161, %s17, 1
      %p163 = scmp.lt.s32.totalorder %s18, 1
      %s164 = scalar_select %p163, %s18, 1
      %s165 = smul.addr %s164, 2
      %s166 = smul.addr %s162, 4
      %s167 = sadd.s32 %s165, %s166
      %s168 = smul.addr %s167, 2
      %s169 = scalar_lea.vmem %s1, %s168
      %p170 = scmp.lt.s32.totalorder %s17, 1
      %s171 = scalar_select %p170, %s17, 1
      %p172 = scmp.lt.s32.totalorder %s18, 1
      %s173 = scalar_select %p172, %s18, 1
      %s174 = smul.addr %s171, 2
      %s175 = sadd.s32 %s173, %s174
      %s176 = smul.addr %s175, 8
      %s177 = scalar_lea.vmem %s2, %s176
      %181 = vst [vmem:[#allocation2 + $0x10] sm:$0xfc] 0
      %v182 = vlaneseq
      %v183 = vand.u32 %v182, 127
      %vm184 = vcmp.lt.s32.totalorder %v183, 0
      %v185 = vsub.s32 0, %v183
      %v186 = vsel %vm184, %v185, %v183
      %v187 = vshrl.u32 %v186, 4
      %v188 = vand.u32 %v186, 15
      %v189 = vsub.s32 0, %v188
      %v190 = vsel %vm184, %v189, %v188
      %vm191 = vcmp.ne.s32.totalorder %v190, 0
      %vm192 = vcmp.lt.s32.totalorder %v190, 0
      %vm193 = vmand %vm192, %vm191
      %v194 = vadd.s32 %v190, 16
      %v195 = vsel %vm193, %v194, %v190
      %v196 = vld [vmem:[%s169] sm:$0x3]
      %v197 = vadd.s32 %v195, 4294967295
      %vm198 = vcmp.ge.s32.totalorder %v197, 0
      %vm199 = vcmp.lt.s32.totalorder %v197, 16
      %vm200 = vmand %vm198, %vm199
      %v201 = vsel %vm200, 1, 0
      %v202 = vpack.c.b16 %v201, %v201
      %vm203 = vcmp.ne.s16.totalorder %v202, 0
      %v204 = vsel %vm203, %v196, 0
      %205 = vst [vmem:[#allocation2] sm:$0x3] %v204
      %v206 = vld [vmem:[%s169] sm:$0xf]
      %v208 = vcombine.low %v206, %v206
      %v210 = vunpack.c.l.s4 1983009808
      %v211 = vunpack.c.0.s8 %v210
      %v212 = vlaneseq
      %v213 = vshrl.u32 %v212, 7
      %v214 = vsub.s32 %v211, %v213
      %v215 = vrot.slane %v208, %v214
      %v216 = vcombine.high %v215, %v215
      %217 = vrot.lane.b32.xlu0 %v215, 127
      %v218 = vpop.permute.xlu0 %217
      %219 = vrot.lane.b32.xlu0 %v216, 127
      %v220 = vpop.permute.xlu0 %219
      %vm221 = vcmask 1039360
      %v222 = vsel %vm221, %v218, %v220
      %224 = vst [vmem:[#allocation2] sm:$0xc] %v222
      %v225 = vld [vmem:[%s169] sm:$0xf]
      %v226 = vadd.s32 %v195, 1
      %vm227 = vcmp.ge.s32.totalorder %v226, 0
      %vm228 = vcmp.lt.s32.totalorder %v226, 16
      %vm229 = vmand %vm227, %vm228
      %v230 = vsel %vm229, 1, 0
      %v231 = vpack.c.b16 %v230, %v230
      %vm232 = vcmp.ne.s16.totalorder %v231, 0
      %v233 = vsel %vm232, 65537, 0
      %234 = vrot.lane.b32.xlu0 %v233, 2
      %v235 = vpop.permute.xlu0 %234
      %v236 = vrot.slane %v235, 6
      %vm237 = vcmask 15360
      %v238 = vsel %vm237, %v236, %v235
      %vm239 = vcmp.ne.s16.totalorder %v238, 0
      %v240 = vsel %vm239, %v225, 0
      %v243 = vunpack.c.l.s4 1983009808
      %v244 = vunpack.c.0.s8 %v243
      %v245 = vlaneseq
      %v246 = vshrl.u32 %v245, 7
      %v247 = vsub.s32 %v244, %v246
      %v248 = vrot.slane %v240, %v247
      %v249 = vcombine.low %v248, %v248
      %250 = vrot.lane.b32.xlu0 %v249, 126
      %v251 = vpop.permute.xlu0 %250
      %252 = vrot.lane.b32.xlu0 %v248, 126
      %v253 = vpop.permute.xlu0 %252
      %vm254 = vcmask 1031168
      %v255 = vsel %vm254, %v251, %v253
      %257 = vst [vmem:[#allocation2] sm:$0x30] %v255
      %v258 = vld [vmem:[%s169] sm:$0xf]
      %v259 = vsel %vm203, 65537, 0
      %260 = vrot.lane.b32.xlu0 %v259, 16
      %v261 = vpop.permute.xlu0 %260
      %v262 = vrot.slane %v261, 6
      %vm263 = vcmask 130048
      %v264 = vsel %vm263, %v262, %v261
      %vm265 = vcmp.ne.s16.totalorder %v264, 0
      %v266 = vsel %vm265, %v258, 0
      %v268 = vcombine.low %v266, %v266
      %v270 = vunpack.c.l.s4 1983009808
      %v271 = vunpack.c.0.s8 %v270
      %v272 = vlaneseq
      %v273 = vshrl.u32 %v272, 7
      %v274 = vsub.s32 %v271, %v273
      %v275 = vrot.slane %v268, %v274
      %v276 = vcombine.low %v275, %v275
      %277 = vrot.lane.b32.xlu0 %v276, 112
      %v278 = vpop.permute.xlu0 %277
      %279 = vrot.lane.b32.xlu0 %v275, 112
      %v280 = vpop.permute.xlu0 %279
      %vm281 = vcmask 916480
      %v282 = vsel %vm281, %v278, %v280
      %284 = vst [vmem:[#allocation2] sm:$0xc0] %v282
      %v285 = vld [vmem:[%s169] sm:$0xf]
      %v288 = vunpack.c.l.s4 1983009808
      %v289 = vunpack.c.0.s8 %v288
      %v290 = vlaneseq
      %v291 = vshrl.u32 %v290, 7
      %v292 = vsub.s32 %v289, %v291
      %v293 = vrot.slane %v285, %v292
      %v294 = vcombine.high %v293, %v293
      %295 = vrot.lane.b32.xlu0 %v293, 111
      %v296 = vpop.permute.xlu0 %295
      %297 = vrot.lane.b32.xlu0 %v294, 111
      %v298 = vpop.permute.xlu0 %297
      %vm299 = vcmask 908288
      %v300 = vsel %vm299, %v296, %v298
      %302 = vst [vmem:[#allocation2 + $0x8] sm:$0x3] %v300
      %v303 = vld [vmem:[%s169] sm:$0xf]
      %304 = vrot.lane.b32.xlu0 %v233, 18
      %v305 = vpop.permute.xlu0 %304
      %v306 = vrot.slane %v305, 6
      %vm307 = vcmask 146432
      %v308 = vsel %vm307, %v306, %v305
      %vm309 = vcmp.ne.s16.totalorder %v308, 0
      %v310 = vsel %vm309, %v303, 0
      %v312 = vcombine.low %v310, %v310
      %v314 = vunpack.c.l.s4 1983009808
      %v315 = vunpack.c.0.s8 %v314
      %v316 = vlaneseq
      %v317 = vshrl.u32 %v316, 7
      %v318 = vsub.s32 %v315, %v317
      %v319 = vrot.slane %v312, %v318
      %v320 = vcombine.high %v319, %v319
      %321 = vrot.lane.b32.xlu0 %v319, 110
      %v322 = vpop.permute.xlu0 %321
      %323 = vrot.lane.b32.xlu0 %v320, 110
      %v324 = vpop.permute.xlu0 %323
      %vm325 = vcmask 900096
      %v326 = vsel %vm325, %v322, %v324
      %328 = vst [vmem:[#allocation2 + $0x8] sm:$0xc] %v326
      %v329 = vld [vmem:[%s169] sm:$0xf]
      %330 = vrot.lane.b32.xlu0 %v259, 32
      %v331 = vpop.permute.xlu0 %330
      %v332 = vrot.slane %v331, 6
      %vm333 = vcmask 261120
      %v334 = vsel %vm333, %v332, %v331
      %vm335 = vcmp.ne.s16.totalorder %v334, 0
      %v336 = vsel %vm335, %v329, 0
      %v339 = vunpack.c.l.s4 1983009808
      %v340 = vunpack.c.0.s8 %v339
      %v341 = vlaneseq
      %v342 = vshrl.u32 %v341, 7
      %v343 = vsub.s32 %v340, %v342
      %v344 = vrot.slane %v336, %v343
      %v345 = vcombine.low %v344, %v344
      %346 = vrot.lane.b32.xlu0 %v345, 96
      %v347 = vpop.permute.xlu0 %346
      %348 = vrot.lane.b32.xlu0 %v344, 96
      %v349 = vpop.permute.xlu0 %348
      %vm350 = vcmask 785408
      %v351 = vsel %vm350, %v347, %v349
      %353 = vst [vmem:[#allocation2 + $0x8] sm:$0x30] %v351
      %v354 = vld [vmem:[%s169] sm:$0xf]
      %v356 = vcombine.low %v354, %v354
      %v358 = vunpack.c.l.s4 1983009808
      %v359 = vunpack.c.0.s8 %v358
      %v360 = vlaneseq
      %v361 = vshrl.u32 %v360, 7
      %v362 = vsub.s32 %v359, %v361
      %v363 = vrot.slane %v356, %v362
      %v364 = vcombine.low %v363, %v363
      %365 = vrot.lane.b32.xlu0 %v364, 95
      %v366 = vpop.permute.xlu0 %365
      %367 = vrot.lane.b32.xlu0 %v363, 95
      %v368 = vpop.permute.xlu0 %367
      %vm369 = vcmask 777216
      %v370 = vsel %vm369, %v366, %v368
      %372 = vst [vmem:[#allocation2 + $0x8] sm:$0xc0] %v370
      %v373 = vld [vmem:[%s169] sm:$0xf]
      %374 = vrot.lane.b32.xlu0 %v233, 34
      %v375 = vpop.permute.xlu0 %374
      %v376 = vrot.slane %v375, 6
      %vm377 = vcmask 277504
      %v378 = vsel %vm377, %v376, %v375
      %vm379 = vcmp.ne.s16.totalorder %v378, 0
      %v380 = vsel %vm379, %v373, 0
      %v383 = vunpack.c.l.s4 1983009808
      %v384 = vunpack.c.0.s8 %v383
      %v385 = vlaneseq
      %v386 = vshrl.u32 %v385, 7
      %v387 = vsub.s32 %v384, %v386
      %v388 = vrot.slane %v380, %v387
      %v389 = vcombine.high %v388, %v388
      %390 = vrot.lane.b32.xlu0 %v388, 94
      %v391 = vpop.permute.xlu0 %390
      %392 = vrot.lane.b32.xlu0 %v389, 94
      %v393 = vpop.permute.xlu0 %392
      %vm394 = vcmask 769024
      %v395 = vsel %vm394, %v391, %v393
      %397 = vst [vmem:[#allocation2 + $0x10] sm:$0x3] %v395
      %v398 = vld [vmem:[%s0] sm:$0xf]
      %v399 = vld [vmem:[#allocation2] sm:$0xff]
      %v400 = vld [vmem:[#allocation2 + $0x8] sm:$0xff]
      %v401 = vld [vmem:[#allocation2 + $0x10] sm:$0xff]
      %vm402 = vcmask 392192
      %v404 = vsel %vm402, %v398, 0
      %406 = vmatprep.subr.bf16.mxu0 0
      %407 = vmatpush1.bf16.msra.mxu0 %v399
      %408 = vmatprep.subr.bf16.mxu0 0
      %409 = vmatpush1.bf16.msra.mxu0 %v400
      %410 = vmatprep.subr.bf16.mxu0 0
      %411 = vmatpush1.bf16.msra.mxu0 %v401
      %412 = vmatprep.subr.bf16.mxu0 0
      %413 = vmatpush1.bf16.msra.mxu0 0
      %414 = vmatprep.subr.bf16.mxu0 0
      %415 = vmatpush1.bf16.msra.mxu0 0
      %416 = vmatprep.subr.bf16.mxu0 0
      %417 = vmatpush1.bf16.msra.mxu0 0
      %418 = vmatprep.subr.bf16.mxu0 0
      %419 = vmatpush1.bf16.msra.mxu0 0
      %420 = vmatprep.subr.bf16.mxu0 0
      %421 = vmatpush1.bf16.msra.mxu0 0
      %422 = vmatprep.subr.bf16.mxu0 0
      %423 = vmatpush1.bf16.msra.mxu0 0
      %424 = vmatprep.subr.bf16.mxu0 0
      %425 = vmatpush1.bf16.msra.mxu0 0
      %426 = vmatprep.subr.bf16.mxu0 0
      %427 = vmatpush1.bf16.msra.mxu0 0
      %428 = vmatprep.subr.bf16.mxu0 0
      %429 = vmatpush1.bf16.msra.mxu0 0
      %430 = vmatprep.subr.bf16.mxu0 0
      %431 = vmatpush1.bf16.msra.mxu0 0
      %432 = vmatprep.subr.bf16.mxu0 0
      %433 = vmatpush1.bf16.msra.mxu0 0
      %434 = vmatprep.subr.bf16.mxu0 0
      %435 = vmatpush1.bf16.msra.mxu0 0
      %436 = vmatprep.subr.bf16.mxu0 0
      %437 = vmatpush1.bf16.msra.mxu0 0
      %438 = vmatprep.mubr.bf16.mxu0 0
      %439 = vmatmul.mubr.bf16.gmra.mrb[0].mxu0 %v404
      %v440 = vpop.f32.mrb[0].mxu0
      %v441 = vadd.f32 0.0, %v440
      %v442 = vpop.f32.mrb[0].mxu0
      %v443 = vpop.f32.mrb[0].mxu0
      %v444 = vpop.f32.mrb[0].mxu0
      %445 = vdwg.mxu0
      %vm446 = vcmp.gt.f32.partialorder %v441, 0.0
      %v447 = vmul.f32 %v441, 0.01
      %v448 = vsel %vm446, %v441, %v447
      %449 = vst [vmem:[%s177] sm:$0xff] %v448
      %p450 = scmp.lt.s32.totalorder %s17, 1
      %s451 = scalar_select %p450, %s17, 1
      %p452 = scmp.lt.s32.totalorder %s18, 1
      %s453 = scalar_select %p452, %s18, 1
      %s454 = smul.addr %s451, 2
      %s455 = sadd.s32 %s453, %s454
      %s456 = smul.addr %s455, 8
      %s457 = scalar_lea.vmem %s2, %s456
      // Predicated region
      $region29: #{_lambda_.1} parent=27 // pred_check
        %p458 = pneg %p94
      $region30: #{_lambda_.1} parent=27 // pred_check_branch
        %460 = sbr.rel (%p458) target = $region32
      $region31: #{_lambda_.1} parent=27 // pred_region
        _
      $region32: #{_lambda_.1} parent=27 // pred_fallthru
        _
    $region28: #{_lambda_.1} parent=5 // pred_fallthru
      _
    %p461 = scmp.le.s32.totalorder 2, %s8
    // Predicated region
    $region33: #{_lambda_.1} parent=5 // pred_check
      %p462 = pneg %p461
    $region34: #{_lambda_.1} parent=5 // pred_check_branch
      %464 = sbr.rel (%p462) target = $region36
    $region35: #{_lambda_.1} parent=5 // pred_region
      %s465 = ssub.s32 %s8, 2
      // Predicated region
      $region37: #{_lambda_.1} parent=35 // pred_check
        %p466 = pneg %p100
      $region38: #{_lambda_.1} parent=35 // pred_check_branch
        %468 = sbr.rel (%p466) target = $region40
      $region39: #{_lambda_.1} parent=35 // pred_region
        %p469 = scmp.lt.s32.totalorder %s19, 1
        %s470 = scalar_select %p469, %s19, 1
        %p471 = scmp.lt.s32.totalorder %s20, 1
        %s472 = scalar_select %p471, %s20, 1
        %s473 = smul.addr %s470, 2
        %s474 = sadd.s32 %s472, %s473
        %s475 = smul.addr %s474, 8
        %s476 = scalar_lea.vmem %s2, %s475
      $region40: #{_lambda_.1} parent=35 // pred_fallthru
        _
    $region36: #{_lambda_.1} parent=5 // pred_fallthru
      _
  $region6: #{_lambda_.1} parent=0 // loop_footer
    %s12 = sadd.s32 1, %s8
  $region7: #{_lambda_.1} parent=0 // loop_footer_branch
    %7 = sbr.rel target = $region3
  $region8: #{_lambda_.1} parent=0 // loop_exit
    _

</llo_original>
